<compile_context>
chip_gen: v5e
topology: v5e:2x2
jax: 0.10.0
libtpu: 0.0.40
codegen_flags: <defaults>
</compile_context>

<pallas_src>
import functools

import jax
import jax.numpy as jnp
from jax.experimental import pallas as pl
from jax.experimental.pallas import tpu as pltpu


def _lp_loss_kernel(x_ref, y_ref, out_ref, *, p, tf, f_valid, mask_tail):
    k = pl.program_id(1)  # feature (reduction) axis

    @pl.when(k == 0)
    def _():
        out_ref[...] = jnp.zeros_like(out_ref)

    x = x_ref[...].astype(jnp.float32)
    y = y_ref[...].astype(jnp.float32)
    d = x - y

    if mask_tail:
        # Zero out lanes past the valid feature count (tail tile / any DMA
        # padding garbage). Select blocks NaN/inf propagation from the pad.
        lane = jax.lax.broadcasted_iota(jnp.int32, d.shape, 1)
        valid = (k * tf + lane) < f_valid
        d = jnp.where(valid, d, 0.0)

    base = d if (p % 2 == 0) else jnp.abs(d)      # |d|**p == d**p for even p
    dp = jax.lax.integer_pow(base, p)             # VPU multiply chain, no EUP

    # Fold the tile's lanes down to the accumulator width with pure VPU adds
    # (lane-aligned halving tree). The final cross-lane reduce happens once in
    # the wrapper epilogue, not per grid step.
    part = dp
    while part.shape[1] > out_ref.shape[1]:
        half = part.shape[1] // 2
        part = part[:, :half] + part[:, half:]
    out_ref[...] += part


def _pick_fold(n, f):
    """Pick r with r | f so n*r fills the 8-sublane dim (for small batches)."""
    if n % 8 == 0 or f <= 1:
        return 1
    best = 1
    for r in range(1, 65):
        if f % r != 0:
            continue
        if r != 1 and f // r < 128:
            continue                     # keep folded rows at least a vreg wide
        if (n * r) % 8 == 0:
            return r                     # smallest r filling all 8 sublanes
        if n * r <= 64:
            best = r
    return best


def lp_loss(x, y, *, p=10):
    """Pallas implementation of LpLoss.forward(input, target) -> scalar f32."""
    assert x.shape == y.shape, (x.shape, y.shape)
    p = int(p)                           # guarantee integer_pow lowering
    assert p >= 1, "LpLoss requires a positive integer p"

    n = x.shape[0]
    f = 1
    for s in x.shape[1:]:
        f *= s

    # --- row folding: (N, F) -> (R, Ff), metadata-only reshape (no HBM copy) -
    r = _pick_fold(n, f)
    rows, ff = n * r, f // r
    xf = x.reshape(rows, ff)
    yf = y.reshape(rows, ff)

    itemsize = int(jnp.dtype(x.dtype).itemsize)

    # --- row tiling: 2 "parallel" row tiles when batch is big enough (v7x) ---
    tr = rows // 2 if (rows % 16 == 0 and rows >= 16) else rows

    # --- feature tiling: lane-dense power-of-two tiles, ~1-2 MiB per block ---
    target_block_bytes = 2 * 1024 * 1024
    max_chunks = 256                      # bounds the in-kernel halving tree
    if ff < 128:
        tf = ff
        wout = ff
    else:
        chunks = min(max(1, target_block_bytes // (tr * itemsize * 128)),
                     max_chunks, ff // 128)
        chunks = 1 << (chunks.bit_length() - 1)   # largest power of two <= chunks
        tf = 128 * chunks
        wout = 128
    grid_f = pl.cdiv(ff, tf)
    mask_tail = (ff % tf) != 0
    grid = (rows // tr, grid_f)

    # 2 inputs x 2 pipeline buffers + f32 compute temporaries + headroom,
    # clamped so it stays safe on v7x's 64 MiB VMEM.
    block_in, block_f32 = tr * tf * itemsize, tr * tf * 4
    vmem_limit = int(4 * block_in + 6 * block_f32 + (4 << 20))
    vmem_limit = min(max(vmem_limit, 32 << 20), 48 << 20)

    kernel = functools.partial(_lp_loss_kernel, p=p, tf=tf, f_valid=ff,
                               mask_tail=mask_tail)

    partials = pl.pallas_call(
        kernel,
        out_shape=jax.ShapeDtypeStruct((rows, wout), jnp.float32),
        grid_spec=pltpu.PrefetchScalarGridSpec(
            num_scalar_prefetch=0,
            grid=grid,
            in_specs=[
                pl.BlockSpec((tr, tf), lambda i, k: (i, k)),
                pl.BlockSpec((tr, tf), lambda i, k: (i, k)),
            ],
            out_specs=pl.BlockSpec((tr, wout), lambda i, k: (i, 0)),
        ),
        compiler_params=pltpu.CompilerParams(
            dimension_semantics=("parallel", "arbitrary"),
            vmem_limit_bytes=vmem_limit,
        ),
    )(xf, yf)

    # --- tiny (few-KB) epilogue: lane reduce, un-fold rows, 1/p root, mean ---
    row_sums = jnp.sum(partials, axis=1)                   # (rows,)
    batch_sums = jnp.sum(row_sums.reshape(n, r), axis=1)   # (N,)
    norm = batch_sums ** (1.0 / p)
    return jnp.mean(norm)


def _reference_lp_loss(x, y, p=10):
    diff = jnp.abs(x.astype(jnp.float32) - y.astype(jnp.float32))
    norm = jnp.sum(diff ** int(p), axis=tuple(range(1, diff.ndim))) ** (1.0 / p)
    return jnp.mean(norm)


if __name__ == "__main__":
    key = jax.random.PRNGKey(0)
    k1, k2, k3, k4 = jax.random.split(key, 4)

    # Primary NCHW shape consistent with the autoencoder training loss.
    x = jax.random.normal(k1, (2, 4, 16, 16), dtype=jnp.float32)
    t = jax.random.normal(k2, (2, 4, 16, 16), dtype=jnp.float32)
    loss = jax.jit(functools.partial(lp_loss, p=10))(x, t)
    jax.block_until_ready(loss)
    ref = _reference_lp_loss(x, t, p=10)
    assert jnp.allclose(loss, ref, rtol=1e-4, atol=1e-5), (loss, ref)

    # Second shape exercises the masked tail-tile path (F not a multiple of 128).
    x2 = jax.random.normal(k3, (2, 3, 10, 10), dtype=jnp.float32)
    t2 = jax.random.normal(k4, (2, 3, 10, 10), dtype=jnp.float32)
    loss2 = jax.jit(functools.partial(lp_loss, p=10))(x2, t2)
    jax.block_until_ready(loss2)
    ref2 = _reference_lp_loss(x2, t2, p=10)
    assert jnp.allclose(loss2, ref2, rtol=1e-4, atol=1e-5), (loss2, ref2)

    print("KERNEL_OK")
</pallas_src>

<mosaic_0001>
module attributes {stable_mosaic.version = 11 : i64} {
  func.func @_lp_loss_kernel(%arg0: i32, %arg1: i32, %arg2: memref<8x256xf32, #tpu.memory_space<vmem>>, %arg3: memref<8x256xf32, #tpu.memory_space<vmem>>, %arg4: memref<8x128xf32, #tpu.memory_space<vmem>>) attributes {dimension_semantics = [#tpu.dimension_semantics<parallel>, #tpu.dimension_semantics<arbitrary>], iteration_bounds = array<i64: 1, 1>, scalar_prefetch = 0 : i64, scratch_operands = 0 : i64, tpu.core_type = #tpu.core_type<tc>, window_params = [{transform_indices = @transform_0, window_bounds = array<i64: 8, 256>}, {transform_indices = @transform_1, window_bounds = array<i64: 8, 256>}, {transform_indices = @transform_2, window_bounds = array<i64: 8, 128>}]} {
    %c0_i32 = arith.constant 0 : i32
    %0 = arith.cmpi eq, %arg1, %c0_i32 : i32
    %1 = arith.extui %0 : i1 to i32
    %c0_i32_0 = arith.constant 0 : i32
    %2 = arith.cmpi ne, %1, %c0_i32_0 : i32
    scf.if %2 {
      %cst = arith.constant 0.000000e+00 : f32
      %16 = vector.broadcast %cst : f32 to vector<8x128xf32>
      %c0_8 = arith.constant 0 : index
      %c0_9 = arith.constant 0 : index
      %17 = vector.load %arg4[%c0_8, %c0_9] : memref<8x128xf32, #tpu.memory_space<vmem>>, vector<8x128xf32>
      tpu.vector_store %arg4[%c0_8, %c0_9], %16 {strides = array<i32>} : memref<8x128xf32, #tpu.memory_space<vmem>>, vector<8x128xf32>,
    } else {
    }
    %c0 = arith.constant 0 : index
    %c0_1 = arith.constant 0 : index
    %3 = vector.load %arg2[%c0, %c0_1] : memref<8x256xf32, #tpu.memory_space<vmem>>, vector<8x256xf32>
    %c0_2 = arith.constant 0 : index
    %c0_3 = arith.constant 0 : index
    %4 = vector.load %arg3[%c0_2, %c0_3] : memref<8x256xf32, #tpu.memory_space<vmem>>, vector<8x256xf32>
    %5 = arith.subf %3, %4 : vector<8x256xf32>
    %6 = arith.mulf %5, %5 : vector<8x256xf32>
    %7 = arith.mulf %6, %6 : vector<8x256xf32>
    %8 = arith.mulf %7, %7 : vector<8x256xf32>
    %9 = arith.mulf %6, %8 : vector<8x256xf32>
    %10 = vector.extract_strided_slice %9 {offsets = [0, 0], sizes = [8, 128], strides = [1, 1]} : vector<8x256xf32> to vector<8x128xf32>
    %11 = vector.extract_strided_slice %9 {offsets = [0, 128], sizes = [8, 128], strides = [1, 1]} : vector<8x256xf32> to vector<8x128xf32>
    %12 = arith.addf %10, %11 : vector<8x128xf32>
    %c0_4 = arith.constant 0 : index
    %c0_5 = arith.constant 0 : index
    %13 = vector.load %arg4[%c0_4, %c0_5] : memref<8x128xf32, #tpu.memory_space<vmem>>, vector<8x128xf32>
    %14 = arith.addf %13, %12 : vector<8x128xf32>
    %c0_6 = arith.constant 0 : index
    %c0_7 = arith.constant 0 : index
    %15 = vector.load %arg4[%c0_6, %c0_7] : memref<8x128xf32, #tpu.memory_space<vmem>>, vector<8x128xf32>
    tpu.vector_store %arg4[%c0_6, %c0_7], %14 {strides = array<i32>} : memref<8x128xf32, #tpu.memory_space<vmem>>, vector<8x128xf32>,
    return
  }
  func.func @transform_0(%arg0: i32, %arg1: i32) -> (i32, i32) {
    %c0_i32 = arith.constant 0 : i32
    return %arg0, %arg1 : i32, i32
  }
  func.func @transform_1(%arg0: i32, %arg1: i32) -> (i32, i32) {
    %c0_i32 = arith.constant 0 : i32
    return %arg0, %arg1 : i32, i32
  }
  func.func @transform_2(%arg0: i32, %arg1: i32) -> (i32, i32) {
    %c0_i32 = arith.constant 0 : i32
    %c0_i32_0 = arith.constant 0 : i32
    return %arg0, %c0_i32 : i32, i32
  }
}

</mosaic_0001>

<llo_original>
// kernel: lp_loss.1
$region0: #{lp_loss.1}
  #allocation0 [shape = 'u32[]', space=smem, size = 0x4, offset = 0x4, fixed_abs, tag = 'smem constant byte address 0x4 - core index']
  #allocation1 [shape = 'u32[72,128]{1,0:T(1,128)}', space=vmem, size = 0x9000, scoped, tag = 'internal scratch']
  %s0 = inlined_call_operand.vmem [shape: f32[8,256], index: 0, kind: input, shape index: {}]
  %s1 = inlined_call_operand.vmem [shape: f32[8,256], index: 1, kind: input, shape index: {}]
  %s2 = inlined_call_operand.vmem [shape: f32[8,128], index: 2, kind: output, shape index: {}]
  %s3 = sld [smem:[#allocation0]]
  $region22: #{lp_loss.1} parent=0
    _
  %s5 = ssub.s32 1, %s3
  %s6 = scalar_select 0, %s5, %s3
  // Predicated region
  $region2: #{lp_loss.1} parent=0 // pred_check
    _
  $region3: #{lp_loss.1} parent=0 // pred_check_branch
    %8 = sbr.rel (0) target = $region5
  $region4: #{lp_loss.1} parent=0 // pred_region
    _
  $region5: #{lp_loss.1} parent=0 // pred_fallthru
    _
  // Predicated region
  $region6: #{lp_loss.1} parent=0 // pred_check
    _
  $region7: #{lp_loss.1} parent=0 // pred_check_branch
    %10 = sbr.rel (0) target = $region9
  $region8: #{lp_loss.1} parent=0 // pred_region
    _
  $region9: #{lp_loss.1} parent=0 // pred_fallthru
    _
  %p11 = scmp.eq.s32.totalorder 0, 0
  // Predicated region
  $region10: #{lp_loss.1} parent=0 // pred_check
    %p12 = pneg %p11
  $region11: #{lp_loss.1} parent=0 // pred_check_branch
    %14 = sbr.rel (%p12) target = $region13
  $region12: #{lp_loss.1} parent=0 // pred_region
    %15 = vst [vmem:[%s2] sm:$0xff] 0.0
  $region13: #{lp_loss.1} parent=0 // pred_fallthru
    _
  %v16 = vld [vmem:[%s0] sm:$0xff]
  %v17 = vld [vmem:[%s0 + $0x8] sm:$0xff]
  %v18 = vld [vmem:[%s1] sm:$0xff]
  %v19 = vld [vmem:[%s1 + $0x8] sm:$0xff]
  %v20 = vsub.f32 %v16, %v18
  %v21 = vsub.f32 %v17, %v19
  %v22 = vmul.f32 %v20, %v20
  %v23 = vmul.f32 %v21, %v21
  %v24 = vmul.f32 %v22, %v22
  %v25 = vmul.f32 %v23, %v23
  %v26 = vmul.f32 %v24, %v24
  %v27 = vmul.f32 %v25, %v25
  %v28 = vmul.f32 %v22, %v26
  %v29 = vmul.f32 %v23, %v27
  %v30 = vadd.f32 %v28, %v29
  %v31 = vld [vmem:[%s2] sm:$0xff]
  %v32 = vadd.f32 %v31, %v30
  %33 = vst [vmem:[%s2] sm:$0xff] %v32
  // Predicated region
  $region14: #{lp_loss.1} parent=0 // pred_check
    _
  $region15: #{lp_loss.1} parent=0 // pred_check_branch
    %35 = sbr.rel (0) target = $region17
  $region16: #{lp_loss.1} parent=0 // pred_region
    _
  $region17: #{lp_loss.1} parent=0 // pred_fallthru
    _
  // Predicated region
  $region18: #{lp_loss.1} parent=0 // pred_check
    _
  $region19: #{lp_loss.1} parent=0 // pred_check_branch
    %37 = sbr.rel (0) target = $region21
  $region20: #{lp_loss.1} parent=0 // pred_region
    _
  $region21: #{lp_loss.1} parent=0 // pred_fallthru
    _

</llo_original>
